<compile_context>
chip_gen: v6e
topology: v6e:2x2x1
jax: 0.10.0
libtpu: 0.0.40
codegen_flags: <defaults>
</compile_context>

<pallas_src>
import jax
import jax.numpy as jnp
from jax.experimental import pallas as pl
from jax.experimental.pallas import tpu as pltpu

LANE = 128     # feature dims padded to a multiple of the lane width
SUBLANE = 8    # sublane granularity for the row axis
_ROW_TILE_CANDIDATES = (512, 384, 256, 128, 64)


def _round_up(x, m):
    return ((x + m - 1) // m) * m


def _pick_row_tile(n):
    """Row tile (multiple of 8) minimizing padded rows; prefer larger tiles on
    ties.  Tiny inputs fall back to one sublane-aligned tile."""
    n8 = _round_up(max(n, 1), SUBLANE)
    best, best_key = None, None
    for t in _ROW_TILE_CANDIDATES:
        if t > n8:
            continue
        key = (_round_up(n, t) - n, -t)   # least waste first, then largest tile
        if best_key is None or key < best_key:
            best_key, best = key, t
    return best if best is not None else n8


# ----------------------------- Pallas kernel --------------------------------
def _double_mlp_kernel(x_ref, w1_ref, b1_ref, w2_ref, b2_ref, o_ref):
    # Layer 1 on the MXU: bf16 operands, f32 accumulation.
    h = jnp.dot(x_ref[...], w1_ref[...], preferred_element_type=jnp.float32)
    h = jnp.maximum(h + b1_ref[...], 0.0)            # bias + ReLU in f32 (VPU)
    # Layer 2: feed the activation back to the MXU in the compute dtype.
    o = jnp.dot(h.astype(w2_ref.dtype), w2_ref[...],
                preferred_element_type=jnp.float32)
    o_ref[...] = (o + b2_ref[...]).astype(o_ref.dtype)


def fused_double_mlp(x_p, w1_p, b1_p, w2_p, b2_p, *, row_tile,
                     out_dtype=jnp.float32):
    """Sender + receiver MLPs in a single pallas_call.

    x_p  : [2, n_p, d_p]  gathered features, already compute dtype + lane padded
    w1_p : [2, d_p, h_p]  b1_p: [2, 1, h_p]  w2_p: [2, h_p, o_p]  b2_p: [2, 1, o_p]
    Returns padded [2, n_p, o_p] in out_dtype.
    """
    _, n_p, d_p = x_p.shape
    h_p = w1_p.shape[2]
    o_p = w2_p.shape[2]
    assert n_p % row_tile == 0

    grid = (2, n_p // row_tile)   # (which MLP, row tile)

    cd = x_p.dtype.itemsize
    wd = w1_p.dtype.itemsize
    od = jnp.dtype(out_dtype).itemsize

    # Scoped-VMEM budget from the actual working set: single-buffered resident
    # weights/biases, double-buffered activation/output streams, f32 scratch.
    vmem_need = ((d_p * h_p + h_p * o_p) * wd          # resident weights (1 buf)
                 + (h_p + o_p) * 4                     # resident biases (f32)
                 + 2 * row_tile * d_p * cd             # x stream (2 bufs)
                 + 2 * row_tile * o_p * od             # out stream (2 bufs)
                 + row_tile * (h_p + o_p) * 4)         # f32 hidden + logits
    vmem_limit = min(max(int(vmem_need * 1.5) + (2 << 20), 32 << 20), 128 << 20)

    flops = 2 * 2 * n_p * (d_p * h_p + h_p * o_p)
    bytes_accessed = (x_p.size * cd + w1_p.size * wd + w2_p.size * wd
                      + b1_p.size * 4 + b2_p.size * 4 + 2 * n_p * o_p * od)

    resident = dict(pipeline_mode=pl.Buffered(1))   # block never changes along rows

    return pl.pallas_call(
        _double_mlp_kernel,
        out_shape=jax.ShapeDtypeStruct((2, n_p, o_p), out_dtype),
        grid_spec=pltpu.PrefetchScalarGridSpec(
            num_scalar_prefetch=0,
            grid=grid,
            in_specs=[
                # activations: one row tile per grid step
                pl.BlockSpec((pl.Squeezed(), row_tile, d_p),
                             lambda m, i: (m, i, 0)),
                # weights / biases: constant along the row axis -> VMEM-resident
                pl.BlockSpec((pl.Squeezed(), d_p, h_p),
                             lambda m, i: (m, 0, 0), **resident),
                pl.BlockSpec((pl.Squeezed(), 1, h_p),
                             lambda m, i: (m, 0, 0), **resident),
                pl.BlockSpec((pl.Squeezed(), h_p, o_p),
                             lambda m, i: (m, 0, 0), **resident),
                pl.BlockSpec((pl.Squeezed(), 1, o_p),
                             lambda m, i: (m, 0, 0), **resident),
            ],
            out_specs=pl.BlockSpec((pl.Squeezed(), row_tile, o_p),
                                   lambda m, i: (m, i, 0)),
        ),
        compiler_params=pltpu.CompilerParams(
            # Pin megacore sharding (v7x) to the MLP axis so each TensorCore
            # holds exactly one weight set; rows stream sequentially per core.
            dimension_semantics=("parallel", "arbitrary"),
            vmem_limit_bytes=vmem_limit),
        cost_estimate=pl.CostEstimate(flops=flops, transcendentals=0,
                                      bytes_accessed=bytes_accessed),
    )(x_p, w1_p, b1_p, w2_p, b2_p)


# ------------------------------ parameters ----------------------------------
def prepare_fused_params(params, *, compute_dtype=jnp.bfloat16):
    """Stack + zero-pad (128-lane) + cast weights/biases ONCE.  The embedding
    table is padded/cast too, so the per-call gather already emits lane-dense
    compute-dtype rows (no per-call activation pad/cast pass)."""
    emb = params["emb_table"]
    sm, rm = params["sender_mlp"], params["receiver_mlp"]
    d = emb.shape[1]
    h_dim = sm["w1"].shape[1]
    o_dim = sm["w2"].shape[1]
    d_p, h_p, o_p = (_round_up(v, LANE) for v in (d, h_dim, o_dim))

    def stack_pad(a, b, pads, dtype):
        return jnp.pad(jnp.stack([a, b]), ((0, 0),) + pads).astype(dtype)

    return {
        "emb_table": jnp.pad(emb, ((0, 0), (0, d_p - d))).astype(compute_dtype),
        "w1": stack_pad(sm["w1"], rm["w1"], ((0, d_p - d), (0, h_p - h_dim)),
                        compute_dtype),
        "b1": stack_pad(sm["b1"], rm["b1"], ((0, 0), (0, h_p - h_dim)),
                        jnp.float32),
        "w2": stack_pad(sm["w2"], rm["w2"], ((0, h_p - h_dim), (0, o_p - o_dim)),
                        compute_dtype),
        "b2": stack_pad(sm["b2"], rm["b2"], ((0, 0), (0, o_p - o_dim)),
                        jnp.float32),
        "dims": (d, h_dim, o_dim),
    }


def init_double_mlp_params(key, *, num_nodes, emb_dim, hidden_dim, out_dim,
                           compute_dtype=jnp.bfloat16):
    """Deterministic parameter construction (synthetic, no checkpoint load)."""
    ks = jax.random.split(key, 9)
    scale_in = 1.0 / jnp.sqrt(emb_dim)
    scale_h = 1.0 / jnp.sqrt(hidden_dim)

    def mlp(k0, k1, k2, k3):
        return {
            "w1": jax.random.uniform(k0, (emb_dim, hidden_dim), jnp.float32,
                                     -scale_in, scale_in),
            "b1": jax.random.uniform(k1, (1, hidden_dim), jnp.float32,
                                     -scale_in, scale_in),
            "w2": jax.random.uniform(k2, (hidden_dim, out_dim), jnp.float32,
                                     -scale_h, scale_h),
            "b2": jax.random.uniform(k3, (1, out_dim), jnp.float32,
                                     -scale_h, scale_h),
        }

    params = {
        # NodeIdFeatureEncoder: embedding table indexed by node id.
        "emb_table": jax.random.normal(ks[0], (num_nodes, emb_dim), jnp.float32),
        "sender_mlp": mlp(ks[1], ks[2], ks[3], ks[4]),
        "receiver_mlp": mlp(ks[5], ks[6], ks[7], ks[8]),
    }
    params["fused"] = prepare_fused_params(params, compute_dtype=compute_dtype)
    return params


# ------------------------------ DoubleMLP -----------------------------------
def double_mlp_forward(params, senders, receivers, *, row_tile=None,
                       out_dtype=jnp.float32):
    """Mirrors DoubleMLP.forward(batched_data) -> (senders_out, receivers_out)."""
    fused = params["fused"]
    _, _, o_dim = fused["dims"]
    n = senders.shape[0]
    tile = row_tile if row_tile is not None else _pick_row_tile(n)
    n_p = _round_up(n, tile)

    # NodeIdFeatureEncoder: node-id -> (pre-padded bf16) embedding row.  Only
    # the tiny index array is padded; the gather output is already kernel-ready.
    # TODO(synk): fold the gather into the kernel (scalar-prefetch indices +
    # per-row DMA gather from a pl.ANY table) to remove this activation pass.
    idx = jnp.stack([senders, receivers]).astype(jnp.int32)
    idx_p = jnp.pad(idx, ((0, 0), (0, n_p - n)))
    feats = jnp.take(fused["emb_table"], idx_p, axis=0)   # [2, n_p, d_p] bf16

    out = fused_double_mlp(feats, fused["w1"], fused["b1"], fused["w2"],
                           fused["b2"], row_tile=tile, out_dtype=out_dtype)
    return out[0, :n, :o_dim], out[1, :n, :o_dim]


def _reference_forward(params, senders, receivers):
    """Pure-JAX f32 reference for the correctness check."""
    def mlp(x, p):
        h = jnp.maximum(x @ p["w1"] + p["b1"], 0.0)
        return h @ p["w2"] + p["b2"]
    s = jnp.take(params["emb_table"], senders, axis=0)
    r = jnp.take(params["emb_table"], receivers, axis=0)
    return mlp(s, params["sender_mlp"]), mlp(r, params["receiver_mlp"])


if __name__ == "__main__":
    key = jax.random.PRNGKey(0)
    NUM_NODES, EMB_DIM, HIDDEN, OUT = 64, 32, 32, 32
    NUM_EDGES = 20   # deliberately not a multiple of 8 to exercise row padding

    pkey, skey, rkey = jax.random.split(key, 3)
    params = init_double_mlp_params(
        pkey, num_nodes=NUM_NODES, emb_dim=EMB_DIM, hidden_dim=HIDDEN,
        out_dim=OUT)

    senders = jax.random.randint(skey, (NUM_EDGES,), 0, NUM_NODES, jnp.int32)
    receivers = jax.random.randint(rkey, (NUM_EDGES,), 0, NUM_NODES, jnp.int32)

    s_out, r_out = double_mlp_forward(params, senders, receivers)
    jax.block_until_ready((s_out, r_out))

    s_ref, r_ref = _reference_forward(params, senders, receivers)
    assert s_out.shape == (NUM_EDGES, OUT) and r_out.shape == (NUM_EDGES, OUT)
    # bf16 table/weights (f32 accumulation) -> loosened tolerance vs f32 ref.
    assert jnp.allclose(s_out, s_ref, atol=5e-2, rtol=5e-2)
    assert jnp.allclose(r_out, r_ref, atol=5e-2, rtol=5e-2)

    print("KERNEL_OK")
</pallas_src>

<mosaic_0001>
module attributes {stable_mosaic.version = 11 : i64} {
  func.func @_double_mlp_kernel(%arg0: i32, %arg1: i32, %arg2: memref<1x24x128xbf16, #tpu.memory_space<vmem>>, %arg3: memref<1x128x128xbf16, #tpu.memory_space<vmem>>, %arg4: memref<1x1x128xf32, #tpu.memory_space<vmem>>, %arg5: memref<1x128x128xbf16, #tpu.memory_space<vmem>>, %arg6: memref<1x1x128xf32, #tpu.memory_space<vmem>>, %arg7: memref<1x24x128xf32, #tpu.memory_space<vmem>>) attributes {dimension_semantics = [#tpu.dimension_semantics<parallel>, #tpu.dimension_semantics<arbitrary>], iteration_bounds = array<i64: 2, 1>, scalar_prefetch = 0 : i64, scratch_operands = 0 : i64, tpu.core_type = #tpu.core_type<tc>, window_params = [{transform_indices = @transform_0, window_bounds = array<i64: 1, 24, 128>}, {pipeline_mode = #tpu.pipeline_mode<synchronous>, transform_indices = @transform_1, window_bounds = array<i64: 1, 128, 128>}, {pipeline_mode = #tpu.pipeline_mode<synchronous>, transform_indices = @transform_2, window_bounds = array<i64: 1, 1, 128>}, {pipeline_mode = #tpu.pipeline_mode<synchronous>, transform_indices = @transform_3, window_bounds = array<i64: 1, 128, 128>}, {pipeline_mode = #tpu.pipeline_mode<synchronous>, transform_indices = @transform_4, window_bounds = array<i64: 1, 1, 128>}, {transform_indices = @transform_5, window_bounds = array<i64: 1, 24, 128>}]} {
    %c0 = arith.constant 0 : index
    %c0_0 = arith.constant 0 : index
    %c0_1 = arith.constant 0 : index
    %0 = vector.load %arg2[%c0, %c0_0, %c0_1] : memref<1x24x128xbf16, #tpu.memory_space<vmem>>, vector<1x24x128xbf16>
    %1 = vector.shape_cast %0 : vector<1x24x128xbf16> to vector<24x128xbf16>
    %c0_2 = arith.constant 0 : index
    %c0_3 = arith.constant 0 : index
    %c0_4 = arith.constant 0 : index
    %2 = vector.load %arg3[%c0_2, %c0_3, %c0_4] : memref<1x128x128xbf16, #tpu.memory_space<vmem>>, vector<1x128x128xbf16>
    %3 = vector.shape_cast %2 : vector<1x128x128xbf16> to vector<128x128xbf16>
    %cst = arith.constant dense<0.000000e+00> : vector<24x128xf32>
    %4 = tpu.matmul %1, %3, %cst {dimension_numbers = #tpu.dot_dimension_numbers<[1], [0], [0], [1], [0, 0, 1, 1], [], []>} : vector<24x128xbf16>, vector<128x128xbf16>, vector<24x128xf32> -> vector<24x128xf32>
    %c0_5 = arith.constant 0 : index
    %c0_6 = arith.constant 0 : index
    %c0_7 = arith.constant 0 : index
    %5 = vector.load %arg4[%c0_5, %c0_6, %c0_7] : memref<1x1x128xf32, #tpu.memory_space<vmem>>, vector<1x1x128xf32>
    %6 = vector.shape_cast %5 : vector<1x1x128xf32> to vector<1x128xf32>
    %7 = vector.broadcast %6 : vector<1x128xf32> to vector<24x128xf32>
    %8 = arith.addf %4, %7 : vector<24x128xf32>
    %cst_8 = arith.constant 0.000000e+00 : f32
    %9 = vector.broadcast %cst_8 : f32 to vector<24x128xf32>
    %10 = arith.maximumf %8, %9 : vector<24x128xf32>
    %11 = arith.truncf %10 : vector<24x128xf32> to vector<24x128xbf16>
    %c0_9 = arith.constant 0 : index
    %c0_10 = arith.constant 0 : index
    %c0_11 = arith.constant 0 : index
    %12 = vector.load %arg5[%c0_9, %c0_10, %c0_11] : memref<1x128x128xbf16, #tpu.memory_space<vmem>>, vector<1x128x128xbf16>
    %13 = vector.shape_cast %12 : vector<1x128x128xbf16> to vector<128x128xbf16>
    %cst_12 = arith.constant dense<0.000000e+00> : vector<24x128xf32>
    %14 = tpu.matmul %11, %13, %cst_12 {dimension_numbers = #tpu.dot_dimension_numbers<[1], [0], [0], [1], [0, 0, 1, 1], [], []>} : vector<24x128xbf16>, vector<128x128xbf16>, vector<24x128xf32> -> vector<24x128xf32>
    %c0_13 = arith.constant 0 : index
    %c0_14 = arith.constant 0 : index
    %c0_15 = arith.constant 0 : index
    %15 = vector.load %arg6[%c0_13, %c0_14, %c0_15] : memref<1x1x128xf32, #tpu.memory_space<vmem>>, vector<1x1x128xf32>
    %16 = vector.shape_cast %15 : vector<1x1x128xf32> to vector<1x128xf32>
    %17 = vector.broadcast %16 : vector<1x128xf32> to vector<24x128xf32>
    %18 = arith.addf %14, %17 : vector<24x128xf32>
    %c0_16 = arith.constant 0 : index
    %c0_17 = arith.constant 0 : index
    %c0_18 = arith.constant 0 : index
    %19 = vector.load %arg7[%c0_16, %c0_17, %c0_18] : memref<1x24x128xf32, #tpu.memory_space<vmem>>, vector<1x24x128xf32>
    %20 = vector.shape_cast %19 : vector<1x24x128xf32> to vector<24x128xf32>
    %21 = vector.shape_cast %18 : vector<24x128xf32> to vector<1x24x128xf32>
    tpu.vector_store %arg7[%c0_16, %c0_17, %c0_18], %21 {strides = array<i32>} : memref<1x24x128xf32, #tpu.memory_space<vmem>>, vector<1x24x128xf32>,
    return
  }
  func.func @transform_0(%arg0: i32, %arg1: i32) -> (i32, i32, i32) {
    %c0_i32 = arith.constant 0 : i32
    %c0_i32_0 = arith.constant 0 : i32
    return %arg0, %arg1, %c0_i32 : i32, i32, i32
  }
  func.func @transform_1(%arg0: i32, %arg1: i32) -> (i32, i32, i32) {
    %c0_i32 = arith.constant 0 : i32
    %c0_i32_0 = arith.constant 0 : i32
    %c0_i32_1 = arith.constant 0 : i32
    return %arg0, %c0_i32, %c0_i32_0 : i32, i32, i32
  }
  func.func @transform_2(%arg0: i32, %arg1: i32) -> (i32, i32, i32) {
    %c0_i32 = arith.constant 0 : i32
    %c0_i32_0 = arith.constant 0 : i32
    %c0_i32_1 = arith.constant 0 : i32
    return %arg0, %c0_i32, %c0_i32_0 : i32, i32, i32
  }
  func.func @transform_3(%arg0: i32, %arg1: i32) -> (i32, i32, i32) {
    %c0_i32 = arith.constant 0 : i32
    %c0_i32_0 = arith.constant 0 : i32
    %c0_i32_1 = arith.constant 0 : i32
    return %arg0, %c0_i32, %c0_i32_0 : i32, i32, i32
  }
  func.func @transform_4(%arg0: i32, %arg1: i32) -> (i32, i32, i32) {
    %c0_i32 = arith.constant 0 : i32
    %c0_i32_0 = arith.constant 0 : i32
    %c0_i32_1 = arith.constant 0 : i32
    return %arg0, %c0_i32, %c0_i32_0 : i32, i32, i32
  }
  func.func @transform_5(%arg0: i32, %arg1: i32) -> (i32, i32, i32) {
    %c0_i32 = arith.constant 0 : i32
    %c0_i32_0 = arith.constant 0 : i32
    return %arg0, %arg1, %c0_i32 : i32, i32, i32
  }
}

</mosaic_0001>

<llo_original>
// kernel: tpu_custom_call.1
$region0: #{tpu_custom_call.1}
  #allocation0 [shape = 'u32[]', space=smem, size = 0x4, offset = 0x4, fixed_abs, tag = 'smem constant byte address 0x4 - core index']
  #allocation1 [shape = 'u32[144,128]{1,0:T(1,128)}', space=vmem, size = 0x12000, scoped, tag = 'internal scratch']
  %s0 = inlined_call_operand.hbm [shape: bf16[2,24,128], index: 0, kind: input, shape index: {}]
  %s1 = inlined_call_operand.hbm [shape: bf16[2,128,128], index: 1, kind: input, shape index: {}]
  %s2 = inlined_call_operand.vmem [shape: f32[2,1,128], index: 2, kind: input, shape index: {}]
  %s3 = inlined_call_operand.hbm [shape: bf16[2,128,128], index: 3, kind: input, shape index: {}]
  %s4 = inlined_call_operand.vmem [shape: f32[2,1,128], index: 4, kind: input, shape index: {}]
  %s5 = inlined_call_operand.hbm [shape: f32[2,24,128], index: 5, kind: output, shape index: {}]
  %s6 = sld [smem:[#allocation0]]
  $region65: #{tpu_custom_call.1} parent=0
    _
  %s8 = ssub.s32 1, %s6
  %s9 = scalar_select 0, %s8, %s6
  $region1: #{tpu_custom_call.1} parent=0
    #allocation2 [shape = 'u8[12288]{0}', space=vmem, size = 0x3000, scoped, tag = 'input window, operand 0']
    #allocation3 [shape = 's32[2]{0}', space=sflag, size = 0x8, scoped, tag = 'scoped memory for tpu_custom_call.1']
    #allocation4 [shape = 's32[2]{0}', space=sflag, size = 0x8, scoped, tag = 'scoped memory for tpu_custom_call.1']
    #allocation5 [shape = 'u8[32768]{0}', space=vmem, size = 0x8000, scoped, tag = 'input window, operand 1, single buffered']
    #allocation6 [shape = 's32[1]{0}', space=sflag, size = 0x4, scoped, tag = 'scoped memory for tpu_custom_call.1']
    #allocation7 [shape = 'u8[32768]{0}', space=vmem, size = 0x8000, scoped, tag = 'input window, operand 3, single buffered']
    #allocation8 [shape = 'u8[24576]{0}', space=vmem, size = 0x6000, scoped, tag = 'output window, operand 0']
    %10 = vsyncpa [#allocation3], 0
    %s11 = scalar_lea.sflag [#allocation3], 1
    %12 = vsyncpa %s11, 0
    %13 = vsyncpa [#allocation6], 0
    %14 = vsyncpa [#allocation4], 0
    %s15 = scalar_lea.sflag [#allocation4], 1
    %16 = vsyncpa %s15, 0
    loop: start=0, step=1, limit=4
    $region2: #{tpu_custom_call.1} parent=1 // loop_pre_header
      _
    $region3: #{tpu_custom_call.1} parent=1 // loop_header
      %s18 = sphi 0, %s22
      %p19 = scmp.ge.s32.totalorder %s18, 4
      %s25 = sphi 0, %s37
      %s26 = sphi 0, %s33
      %s27 = sphi 0, %s25
      %s28 = sphi 0, %s26
      %s29 = sphi 0, %s27
      %s30 = sphi 0, %s28
      %s42 = sphi 0, %s44
      %s45 = sphi 0, %s42
      %s46 = sphi 0, %s45
      %s62 = sphi 0, %s46
      %s68 = sphi 0, %s70
      %s71 = sphi 0, %s68
      %s72 = sphi 0, %s71
      %s88 = sphi 0, %s72
      %s94 = sphi 0, %s96
      %s97 = sphi 0, %s94
      %s98 = sphi 0, %s97
      %s114 = sphi 0, %s98
      %s120 = sphi 0, %s122
      %s123 = sphi 0, %s120
      %s124 = sphi 0, %s123
      %s140 = sphi 0, %s124
      %s146 = sphi 0, %s148
      %s149 = sphi 0, %s146
      %s150 = sphi 0, %s149
      %s166 = sphi 0, %s150
      %s174 = sphi 0, %s176
      %s177 = sphi 0, %s174
      %s178 = sphi 0, %s177
      %s194 = sphi 0, %s178
    $region4: #{tpu_custom_call.1} parent=1 // loop_header_branch
      %21 = sbr.rel (%p19) target = $region8
    $region5: #{tpu_custom_call.1} parent=1 // loop_body
      %s23 = ssub.s32 %s18, 1
      %s24 = ssub.s32 %s18, 2
      %s31 = sadd.s32 1, %s26
      %p32 = scmp.ge.s32.totalorder %s31, 1
      %s33 = scalar_select %p32, 0, %s31
      %s34 = sadd.s32 1, %s25
      %s35 = scalar_select %p32, %s34, %s25
      %p36 = scmp.ge.s32.totalorder %s35, 2
      %s37 = scalar_select %p36, 0, %s35
      %s38 = ssub.s32 %s25, %s37
      %s39 = ssub.s32 %s26, %s33
      %s40 = sor.u32 %s38, %s39
      %p41 = scmp.eq.s32.totalorder %s40, 0
      %s43 = sadd.s32 %s42, 1
      %s44 = scalar_select %p41, %s42, %s43
      %p47 = pneg %p41
      %p48 = scmp.eq.s32.totalorder %s18, 1
      %p49 = por %p47, %p48
      %p50 = scmp.ne.s32.totalorder %s42, %s45
      %p51 = scmp.eq.s32.totalorder %s18, 0
      %p52 = por %p50, %p51
      %p53 = scmp.ne.s32.totalorder %s42, %s45
      %p54 = scmp.eq.s32.totalorder %s23, 1
      %p55 = por %p53, %p54
      %p56 = scmp.ne.s32.totalorder %s45, %s46
      %p57 = scmp.eq.s32.totalorder %s23, 0
      %p58 = por %p56, %p57
      %p59 = scmp.ne.s32.totalorder %s45, %s46
      %p60 = scmp.eq.s32.totalorder %s24, 1
      %p61 = por %p59, %p60
      %p63 = scmp.ne.s32.totalorder %s46, %s62
      %p64 = scmp.eq.s32.totalorder %s24, 0
      %p65 = por %p63, %p64
      %s66 = ssub.s32 %s25, %s37
      %p67 = scmp.eq.s32.totalorder %s66, 0
      %s69 = sadd.s32 %s68, 1
      %s70 = scalar_select %p67, %s68, %s69
      %p73 = pneg %p67
      %p74 = scmp.eq.s32.totalorder %s18, 1
      %p75 = por %p73, %p74
      %p76 = scmp.ne.s32.totalorder %s68, %s71
      %p77 = scmp.eq.s32.totalorder %s18, 0
      %p78 = por %p76, %p77
      %p79 = scmp.ne.s32.totalorder %s68, %s71
      %p80 = scmp.eq.s32.totalorder %s23, 1
      %p81 = por %p79, %p80
      %p82 = scmp.ne.s32.totalorder %s71, %s72
      %p83 = scmp.eq.s32.totalorder %s23, 0
      %p84 = por %p82, %p83
      %p85 = scmp.ne.s32.totalorder %s71, %s72
      %p86 = scmp.eq.s32.totalorder %s24, 1
      %p87 = por %p85, %p86
      %p89 = scmp.ne.s32.totalorder %s72, %s88
      %p90 = scmp.eq.s32.totalorder %s24, 0
      %p91 = por %p89, %p90
      %s92 = ssub.s32 %s25, %s37
      %p93 = scmp.eq.s32.totalorder %s92, 0
      %s95 = sadd.s32 %s94, 1
      %s96 = scalar_select %p93, %s94, %s95
      %p99 = pneg %p93
      %p100 = scmp.eq.s32.totalorder %s18, 1
      %p101 = por %p99, %p100
      %p102 = scmp.ne.s32.totalorder %s94, %s97
      %p103 = scmp.eq.s32.totalorder %s18, 0
      %p104 = por %p102, %p103
      %p105 = scmp.ne.s32.totalorder %s94, %s97
      %p106 = scmp.eq.s32.totalorder %s23, 1
      %p107 = por %p105, %p106
      %p108 = scmp.ne.s32.totalorder %s97, %s98
      %p109 = scmp.eq.s32.totalorder %s23, 0
      %p110 = por %p108, %p109
      %p111 = scmp.ne.s32.totalorder %s97, %s98
      %p112 = scmp.eq.s32.totalorder %s24, 1
      %p113 = por %p111, %p112
      %p115 = scmp.ne.s32.totalorder %s98, %s114
      %p116 = scmp.eq.s32.totalorder %s24, 0
      %p117 = por %p115, %p116
      %s118 = ssub.s32 %s25, %s37
      %p119 = scmp.eq.s32.totalorder %s118, 0
      %s121 = sadd.s32 %s120, 1
      %s122 = scalar_select %p119, %s120, %s121
      %p125 = pneg %p119
      %p126 = scmp.eq.s32.totalorder %s18, 1
      %p127 = por %p125, %p126
      %p128 = scmp.ne.s32.totalorder %s120, %s123
      %p129 = scmp.eq.s32.totalorder %s18, 0
      %p130 = por %p128, %p129
      %p131 = scmp.ne.s32.totalorder %s120, %s123
      %p132 = scmp.eq.s32.totalorder %s23, 1
      %p133 = por %p131, %p132
      %p134 = scmp.ne.s32.totalorder %s123, %s124
      %p135 = scmp.eq.s32.totalorder %s23, 0
      %p136 = por %p134, %p135
      %p137 = scmp.ne.s32.totalorder %s123, %s124
      %p138 = scmp.eq.s32.totalorder %s24, 1
      %p139 = por %p137, %p138
      %p141 = scmp.ne.s32.totalorder %s124, %s140
      %p142 = scmp.eq.s32.totalorder %s24, 0
      %p143 = por %p141, %p142
      %s144 = ssub.s32 %s25, %s37
      %p145 = scmp.eq.s32.totalorder %s144, 0
      %s147 = sadd.s32 %s146, 1
      %s148 = scalar_select %p145, %s146, %s147
      %p151 = pneg %p145
      %p152 = scmp.eq.s32.totalorder %s18, 1
      %p153 = por %p151, %p152
      %p154 = scmp.ne.s32.totalorder %s146, %s149
      %p155 = scmp.eq.s32.totalorder %s18, 0
      %p156 = por %p154, %p155
      %p157 = scmp.ne.s32.totalorder %s146, %s149
      %p158 = scmp.eq.s32.totalorder %s23, 1
      %p159 = por %p157, %p158
      %p160 = scmp.ne.s32.totalorder %s149, %s150
      %p161 = scmp.eq.s32.totalorder %s23, 0
      %p162 = por %p160, %p161
      %p163 = scmp.ne.s32.totalorder %s149, %s150
      %p164 = scmp.eq.s32.totalorder %s24, 1
      %p165 = por %p163, %p164
      %p167 = scmp.ne.s32.totalorder %s150, %s166
      %p168 = scmp.eq.s32.totalorder %s24, 0
      %p169 = por %p167, %p168
      %s170 = ssub.s32 %s25, %s37
      %s171 = ssub.s32 %s26, %s33
      %s172 = sor.u32 %s170, %s171
      %p173 = scmp.eq.s32.totalorder %s172, 0
      %s175 = sadd.s32 %s174, 1
      %s176 = scalar_select %p173, %s174, %s175
      %p179 = pneg %p173
      %p180 = scmp.eq.s32.totalorder %s18, 1
      %p181 = por %p179, %p180
      %p182 = scmp.ne.s32.totalorder %s174, %s177
      %p183 = scmp.eq.s32.totalorder %s18, 0
      %p184 = por %p182, %p183
      %p185 = scmp.ne.s32.totalorder %s174, %s177
      %p186 = scmp.eq.s32.totalorder %s23, 1
      %p187 = por %p185, %p186
      %p188 = scmp.ne.s32.totalorder %s177, %s178
      %p189 = scmp.eq.s32.totalorder %s23, 0
      %p190 = por %p188, %p189
      %p191 = scmp.ne.s32.totalorder %s177, %s178
      %p192 = scmp.eq.s32.totalorder %s24, 1
      %p193 = por %p191, %p192
      %p195 = scmp.ne.s32.totalorder %s178, %s194
      %p196 = scmp.eq.s32.totalorder %s24, 0
      %p197 = por %p195, %p196
      %p198 = scmp.le.s32.totalorder 1, %s18
      %p199 = scmp.lt.s32.totalorder %s18, 3
      %p200 = pnand %p198, %p199
      %p201 = pneg %p200
      // Predicated region
      $region9: #{tpu_custom_call.1} parent=5 // pred_check
        _
      $region10: #{tpu_custom_call.1} parent=5 // pred_check_branch
        %203 = sbr.rel (%p200) target = $region12
      $region11: #{tpu_custom_call.1} parent=5 // pred_region
        %s204 = ssub.s32 %s18, 1
        // Predicated region
        $region13: #{tpu_custom_call.1} parent=11 // pred_check
          %p205 = pneg %p84
        $region14: #{tpu_custom_call.1} parent=11 // pred_check_branch
          %207 = sbr.rel (%p205) target = $region16
        $region15: #{tpu_custom_call.1} parent=11 // pred_region
          %s209 = ssub.s32 1024, 1024
          %210 = vsyncadd [#allocation6], %s209
          %s211 = smul.addr %s27, 16
          %s212 = smul.addr %s211, 64
          %s213 = scalar_lea.hbm %s1, %s212
          %s214 = sshll.u32 [#allocation5], 4
          %s215 = int_to_ptr.vmem [resolvable:$true] %s214
          %220 = dma.hbm_to_vmem [thread:$0]  %s213, 1024, %s215, [#allocation6], 64, 64, 4
        $region16: #{tpu_custom_call.1} parent=11 // pred_fallthru
          _
        // Predicated region
        $region17: #{tpu_custom_call.1} parent=11 // pred_check
          %p221 = pneg %p110
        $region18: #{tpu_custom_call.1} parent=11 // pred_check_branch
          %223 = sbr.rel (%p221) target = $region20
        $region19: #{tpu_custom_call.1} parent=11 // pred_region
          %p224 = scmp.lt.s32.totalorder %s27, 1
          %s225 = scalar_select %p224, %s27, 1
          %s226 = scalar_lea.vmem %s2, %s225
        $region20: #{tpu_custom_call.1} parent=11 // pred_fallthru
          _
        // Predicated region
        $region21: #{tpu_custom_call.1} parent=11 // pred_check
          %p227 = pneg %p136
        $region22: #{tpu_custom_call.1} parent=11 // pred_check_branch
          %229 = sbr.rel (%p227) target = $region24
        $region23: #{tpu_custom_call.1} parent=11 // pred_region
          %s231 = ssub.s32 1024, 1024
          %232 = vsyncadd [#allocation6], %s231
          %s233 = smul.addr %s27, 16
          %s234 = smul.addr %s233, 64
          %s235 = scalar_lea.hbm %s3, %s234
          %s236 = sshll.u32 [#allocation7], 4
          %s237 = int_to_ptr.vmem [resolvable:$true] %s236
          %242 = dma.hbm_to_vmem [thread:$0]  %s235, 1024, %s237, [#allocation6], 64, 64, 4
        $region24: #{tpu_custom_call.1} parent=11 // pred_fallthru
          _
        // Predicated region
        $region25: #{tpu_custom_call.1} parent=11 // pred_check
          %p243 = pneg %p162
        $region26: #{tpu_custom_call.1} parent=11 // pred_check_branch
          %245 = sbr.rel (%p243) target = $region28
        $region27: #{tpu_custom_call.1} parent=11 // pred_region
          %p246 = scmp.lt.s32.totalorder %s27, 1
          %s247 = scalar_select %p246, %s27, 1
          %s248 = scalar_lea.vmem %s4, %s247
        $region28: #{tpu_custom_call.1} parent=11 // pred_fallthru
          _
      $region12: #{tpu_custom_call.1} parent=5 // pred_fallthru
        _
      %p249 = scmp.lt.s32.totalorder %s18, 2
      // Predicated region
      $region29: #{tpu_custom_call.1} parent=5 // pred_check
        %p250 = pneg %p249
      $region30: #{tpu_custom_call.1} parent=5 // pred_check_branch
        %252 = sbr.rel (%p250) target = $region32
      $region31: #{tpu_custom_call.1} parent=5 // pred_region
        // Predicated region
        $region33: #{tpu_custom_call.1} parent=31 // pred_check
          %p253 = pneg %p52
        $region34: #{tpu_custom_call.1} parent=31 // pred_check_branch
          %255 = sbr.rel (%p253) target = $region36
        $region35: #{tpu_custom_call.1} parent=31 // pred_region
          %s256 = sand.u32 %s42, 1
          %s257 = scalar_lea.sflag [#allocation3], %s256
          %s258 = sand.u32 %s42, 1
          %s259 = smul.addr %s258, 12
          %s260 = scalar_lea.vmem [#allocation2], %s259
          %s261 = smul.u32 3, %s26
          %s263 = ssub.s32 192, 192
          %264 = vsyncadd %s257, %s263
          %s265 = smul.addr %s25, 3
          %s266 = sadd.s32 %s261, %s265
          %s267 = smul.addr %s266, 64
          %s268 = scalar_lea.hbm %s0, %s267
          %s269 = sshll.u32 %s260, 4
          %s270 = int_to_ptr.vmem [resolvable:$true] %s269
          %275 = dma.hbm_to_vmem [thread:$0]  %s268, 192, %s270, %s257, 64, 64, 4
        $region36: #{tpu_custom_call.1} parent=31 // pred_fallthru
          _
      $region32: #{tpu_custom_call.1} parent=5 // pred_fallthru
        _
      %p276 = scmp.le.s32.totalorder 1, %s18
      %p277 = scmp.lt.s32.totalorder %s18, 3
      %p278 = pnand %p276, %p277
      %p279 = pneg %p278
      // Predicated region
      $region37: #{tpu_custom_call.1} parent=5 // pred_check
        _
      $region38: #{tpu_custom_call.1} parent=5 // pred_check_branch
        %281 = sbr.rel (%p278) target = $region40
      $region39: #{tpu_custom_call.1} parent=5 // pred_region
        %s282 = ssub.s32 %s18, 1
        %s283 = sand.u32 %s45, 1
        %s284 = scalar_lea.sflag [#allocation3], %s283
        %s285 = sand.u32 %s45, 1
        %s286 = smul.addr %s285, 12
        %s287 = scalar_lea.vmem [#allocation2], %s286
        // Predicated region
        $region41: #{tpu_custom_call.1} parent=39 // pred_check
          %p288 = pneg %p58
        $region42: #{tpu_custom_call.1} parent=39 // pred_check_branch
          %290 = sbr.rel (%p288) target = $region44
        $region43: #{tpu_custom_call.1} parent=39 // pred_region
          %291 = dma.done %s284, 192
        $region44: #{tpu_custom_call.1} parent=39 // pred_fallthru
          _
        // Predicated region
        $region45: #{tpu_custom_call.1} parent=39 // pred_check
          %p292 = pneg %p84
        $region46: #{tpu_custom_call.1} parent=39 // pred_check_branch
          %294 = sbr.rel (%p292) target = $region48
        $region47: #{tpu_custom_call.1} parent=39 // pred_region
          %295 = dma.done [#allocation6], 1024
        $region48: #{tpu_custom_call.1} parent=39 // pred_fallthru
          _
        // Predicated region
        $region49: #{tpu_custom_call.1} parent=39 // pred_check
          %p296 = pneg %p136
        $region50: #{tpu_custom_call.1} parent=39 // pred_check_branch
          %298 = sbr.rel (%p296) target = $region52
        $region51: #{tpu_custom_call.1} parent=39 // pred_region
          %299 = dma.done [#allocation6], 1024
        $region52: #{tpu_custom_call.1} parent=39 // pred_fallthru
          _
        %s300 = sand.u32 %s45, 1
        %s301 = scalar_lea.sflag [#allocation3], %s300
        %s302 = sand.u32 %s45, 1
        %s303 = smul.addr %s302, 12
        %s304 = scalar_lea.vmem [#allocation2], %s303
        %p305 = pneg %p58
        %p306 = pneg %p55
        %p307 = pneg %p84
        %p308 = pneg %p81
        %p309 = scmp.lt.s32.totalorder %s27, 1
        %s310 = scalar_select %p309, %s27, 1
        %s311 = scalar_lea.vmem %s2, %s310
        %p312 = pneg %p110
        %p313 = pneg %p107
        %p314 = pneg %p136
        %p315 = pneg %p133
        %p316 = scmp.lt.s32.totalorder %s27, 1
        %s317 = scalar_select %p316, %s27, 1
        %s318 = scalar_lea.vmem %s4, %s317
        %p319 = pneg %p162
        %p320 = pneg %p159
        %p321 = pneg %p190
        %p322 = pneg %p187
        %s323 = sand.u32 %s177, 1
        %s324 = scalar_lea.sflag [#allocation4], %s323
        %s325 = sand.u32 %s177, 1
        %s326 = smul.addr %s325, 24
        %s327 = scalar_lea.vmem [#allocation8], %s326
        %s328 = smul.u32 3, %s28
        %p329 = scmp.lt.s32.totalorder %s27, 1
        %s330 = scalar_select %p329, %s27, 1
        %s331 = scalar_lea.vmem %s2, %s330
        %p332 = scmp.lt.s32.totalorder %s27, 1
        %s333 = scalar_select %p332, %s27, 1
        %s334 = scalar_lea.vmem %s4, %s333
        %s335 = smul.u32 3, %s28
        %v337 = vld [vmem:[%s287] sm:$0xf]
        %v338 = vld [vmem:[%s287 + $0x4] sm:$0xf]
        %v339 = vld [vmem:[%s287 + $0x8] sm:$0xf]
        %v340 = vld [vmem:[#allocation5] sm:$0xf]
        %v341 = vld [vmem:[#allocation5 + $0x4] sm:$0xf]
        %v342 = vld [vmem:[#allocation5 + $0x8] sm:$0xf]
        %v343 = vld [vmem:[#allocation5 + $0xc] sm:$0xf]
        %v344 = vld [vmem:[#allocation5 + $0x10] sm:$0xf]
        %v345 = vld [vmem:[#allocation5 + $0x14] sm:$0xf]
        %v346 = vld [vmem:[#allocation5 + $0x18] sm:$0xf]
        %v347 = vld [vmem:[#allocation5 + $0x1c] sm:$0xf]
        %v348 = vld [vmem:[#allocation5 + $0x20] sm:$0xf]
        %v349 = vld [vmem:[#allocation5 + $0x24] sm:$0xf]
        %v350 = vld [vmem:[#allocation5 + $0x28] sm:$0xf]
        %v351 = vld [vmem:[#allocation5 + $0x2c] sm:$0xf]
        %v352 = vld [vmem:[#allocation5 + $0x30] sm:$0xf]
        %v353 = vld [vmem:[#allocation5 + $0x34] sm:$0xf]
        %v354 = vld [vmem:[#allocation5 + $0x38] sm:$0xf]
        %v355 = vld [vmem:[#allocation5 + $0x3c] sm:$0xf]
        %v356 = vld [vmem:[%s331] sm:$0x1]
        %v358 = vlaneseq
        %v359 = vshrl.u32 %v358, 7
        %v360 = vsub.s32 0, %v359
        %v361 = vrot.slane %v356, %v360
        %v366 = vunpack.c.l.b16 %v337
        %v367 = vunpack.c.l.b16 %v338
        %v368 = vunpack.c.l.b16 %v339
        %v369 = vpack.c.b16 %v367, %v366
        %v370 = vpack.c.b16 %v368, %v368
        %v389 = vunpack.c.l.b16 %v340
        %v390 = vunpack.c.l.b16 %v341
        %v391 = vunpack.c.l.b16 %v342
        %v392 = vunpack.c.l.b16 %v343
        %v393 = vunpack.c.l.b16 %v344
        %v394 = vunpack.c.l.b16 %v345
        %v395 = vunpack.c.l.b16 %v346
        %v396 = vunpack.c.l.b16 %v347
        %v397 = vunpack.c.l.b16 %v348
        %v398 = vunpack.c.l.b16 %v349
        %v399 = vunpack.c.l.b16 %v350
        %v400 = vunpack.c.l.b16 %v351
        %v401 = vunpack.c.l.b16 %v352
        %v402 = vunpack.c.l.b16 %v353
        %v403 = vunpack.c.l.b16 %v354
        %v404 = vunpack.c.l.b16 %v355
        %v405 = vpack.c.b16 %v390, %v389
        %v406 = vpack.c.b16 %v392, %v391
        %v407 = vpack.c.b16 %v394, %v393
        %v408 = vpack.c.b16 %v396, %v395
        %v409 = vpack.c.b16 %v398, %v397
        %v410 = vpack.c.b16 %v400, %v399
        %v411 = vpack.c.b16 %v402, %v401
        %v412 = vpack.c.b16 %v404, %v403
        %421 = vmatprep.subr.bf16.mxu0 0
        %422 = vmatpush1.bf16.msra.mxu0 %v412
        %423 = vmatprep.subr.bf16.mxu0 0
        %424 = vmatpush1.bf16.msra.mxu0 %v411
        %425 = vmatprep.subr.bf16.mxu0 0
        %426 = vmatpush1.bf16.msra.mxu0 %v410
        %427 = vmatprep.subr.bf16.mxu0 0
        %428 = vmatpush1.bf16.msra.mxu0 %v409
        %429 = vmatprep.subr.bf16.mxu0 0
        %430 = vmatpush1.bf16.msra.mxu0 %v408
        %431 = vmatprep.subr.bf16.mxu0 0
        %432 = vmatpush1.bf16.msra.mxu0 %v407
        %433 = vmatprep.subr.bf16.mxu0 0
        %434 = vmatpush1.bf16.msra.mxu0 %v406
        %435 = vmatprep.subr.bf16.mxu0 0
        %436 = vmatpush1.bf16.msra.mxu0 %v405
        %437 = vmatprep.subr.bf16.mxu0 0
        %438 = vmatpush2.bf16.msra.mxu0 0
        %439 = vmatprep.subr.bf16.mxu0 0
        %440 = vmatpush2.bf16.msra.mxu0 0
        %441 = vmatprep.subr.bf16.mxu0 0
        %442 = vmatpush2.bf16.msra.mxu0 0
        %443 = vmatprep.subr.bf16.mxu0 0
        %444 = vmatpush2.bf16.msra.mxu0 0
        %445 = vmatprep.subr.bf16.mxu0 0
        %446 = vmatpush2.bf16.msra.mxu0 0
        %447 = vmatprep.subr.bf16.mxu0 0
        %448 = vmatpush2.bf16.msra.mxu0 0
        %449 = vmatprep.subr.bf16.mxu0 0
        %450 = vmatpush2.bf16.msra.mxu0 0
        %451 = vmatprep.subr.bf16.mxu0 0
        %452 = vmatpush2.bf16.msra.mxu0 0
        %453 = vmatprep.mubr.bf16.mxu0 0
        %454 = vmatmul.mubr.bf16.gmra.mxu0 %v369
        %v455 = vpop.f32.mrf.mxu0
        %v456 = vadd.f32 %v361, %v455
        %v457 = vpop.f32.mrf.mxu0
        %v458 = vpop.f32.mrf.mxu0
        %v459 = vadd.f32 %v361, %v458
        %v460 = vpop.f32.mrf.mxu0
        %461 = vmatprep.mubr.bf16.mxu0 0
        %462 = vmatmul.mubr.bf16.gmra.mxu0 %v370
        %v463 = vpop.f32.mrf.mxu0
        %v464 = vadd.f32 %v361, %v463
        %v465 = vpop.f32.mrf.mxu0
        %v466 = vpop.f32.mrf.mxu0
        %v467 = vpop.f32.mrf.mxu0
        %468 = vdwg.mxu0
        %v469 = vmax.f32 %v456, 0.0
        %v470 = vmax.f32 %v459, 0.0
        %v471 = vmax.f32 %v464, 0.0
        %v472 = vpack.c.bf16 %v470, %v469
        %v473 = vpack.c.bf16 %v471, %v471
        %v474 = vld [vmem:[#allocation7] sm:$0xf]
        %v475 = vld [vmem:[#allocation7 + $0x4] sm:$0xf]
        %v476 = vld [vmem:[#allocation7 + $0x8] sm:$0xf]
        %v477 = vld [vmem:[#allocation7 + $0xc] sm:$0xf]
        %v478 = vld [vmem:[#allocation7 + $0x10] sm:$0xf]
        %v479 = vld [vmem:[#allocation7 + $0x14] sm:$0xf]
        %v480 = vld [vmem:[#allocation7 + $0x18] sm:$0xf]
        %v481 = vld [vmem:[#allocation7 + $0x1c] sm:$0xf]
        %v482 = vld [vmem:[#allocation7 + $0x20] sm:$0xf]
        %v483 = vld [vmem:[#allocation7 + $0x24] sm:$0xf]
        %v484 = vld [vmem:[#allocation7 + $0x28] sm:$0xf]
        %v485 = vld [vmem:[#allocation7 + $0x2c] sm:$0xf]
        %v486 = vld [vmem:[#allocation7 + $0x30] sm:$0xf]
        %v487 = vld [vmem:[#allocation7 + $0x34] sm:$0xf]
        %v488 = vld [vmem:[#allocation7 + $0x38] sm:$0xf]
        %v489 = vld [vmem:[#allocation7 + $0x3c] sm:$0xf]
        %v490 = vld [vmem:[%s334] sm:$0x1]
        %v492 = vlaneseq
        %v493 = vshrl.u32 %v492, 7
        %v494 = vsub.s32 0, %v493
        %v495 = vrot.slane %v490, %v494
        %v513 = vunpack.c.l.b16 %v474
        %v514 = vunpack.c.l.b16 %v475
        %v515 = vunpack.c.l.b16 %v476
        %v516 = vunpack.c.l.b16 %v477
        %v517 = vunpack.c.l.b16 %v478
        %v518 = vunpack.c.l.b16 %v479
        %v519 = vunpack.c.l.b16 %v480
        %v520 = vunpack.c.l.b16 %v481
        %v521 = vunpack.c.l.b16 %v482
        %v522 = vunpack.c.l.b16 %v483
        %v523 = vunpack.c.l.b16 %v484
        %v524 = vunpack.c.l.b16 %v485
        %v525 = vunpack.c.l.b16 %v486
        %v526 = vunpack.c.l.b16 %v487
        %v527 = vunpack.c.l.b16 %v488
        %v528 = vunpack.c.l.b16 %v489
        %v529 = vpack.c.b16 %v514, %v513
        %v530 = vpack.c.b16 %v516, %v515
        %v531 = vpack.c.b16 %v518, %v517
        %v532 = vpack.c.b16 %v520, %v519
        %v533 = vpack.c.b16 %v522, %v521
        %v534 = vpack.c.b16 %v524, %v523
        %v535 = vpack.c.b16 %v526, %v525
        %v536 = vpack.c.b16 %v528, %v527
        %545 = vmatprep.subr.bf16.mxu0 0
        %546 = vmatpush1.bf16.msra.mxu0 %v536
        %547 = vmatprep.subr.bf16.mxu0 0
        %548 = vmatpush1.bf16.msra.mxu0 %v535
        %549 = vmatprep.subr.bf16.mxu0 0
        %550 = vmatpush1.bf16.msra.mxu0 %v534
        %551 = vmatprep.subr.bf16.mxu0 0
        %552 = vmatpush1.bf16.msra.mxu0 %v533
        %553 = vmatprep.subr.bf16.mxu0 0
        %554 = vmatpush1.bf16.msra.mxu0 %v532
        %555 = vmatprep.subr.bf16.mxu0 0
        %556 = vmatpush1.bf16.msra.mxu0 %v531
        %557 = vmatprep.subr.bf16.mxu0 0
        %558 = vmatpush1.bf16.msra.mxu0 %v530
        %559 = vmatprep.subr.bf16.mxu0 0
        %560 = vmatpush1.bf16.msra.mxu0 %v529
        %561 = vmatprep.subr.bf16.mxu0 0
        %562 = vmatpush2.bf16.msra.mxu0 0
        %563 = vmatprep.subr.bf16.mxu0 0
        %564 = vmatpush2.bf16.msra.mxu0 0
        %565 = vmatprep.subr.bf16.mxu0 0
        %566 = vmatpush2.bf16.msra.mxu0 0
        %567 = vmatprep.subr.bf16.mxu0 0
        %568 = vmatpush2.bf16.msra.mxu0 0
        %569 = vmatprep.subr.bf16.mxu0 0
        %570 = vmatpush2.bf16.msra.mxu0 0
        %571 = vmatprep.subr.bf16.mxu0 0
        %572 = vmatpush2.bf16.msra.mxu0 0
        %573 = vmatprep.subr.bf16.mxu0 0
        %574 = vmatpush2.bf16.msra.mxu0 0
        %575 = vmatprep.subr.bf16.mxu0 0
        %576 = vmatpush2.bf16.msra.mxu0 0
        %577 = vmatprep.mubr.bf16.mxu0 0
        %578 = vmatmul.mubr.bf16.gmra.mxu0 %v472
        %v579 = vpop.f32.mrf.mxu0
        %v580 = vadd.f32 %v495, %v579
        %v581 = vpop.f32.mrf.mxu0
        %v582 = vpop.f32.mrf.mxu0
        %v583 = vadd.f32 %v495, %v582
        %v584 = vpop.f32.mrf.mxu0
        %585 = vmatprep.mubr.bf16.mxu0 0
        %586 = vmatmul.mubr.bf16.gmra.mxu0 %v473
        %v587 = vpop.f32.mrf.mxu0
        %v588 = vadd.f32 %v495, %v587
        %v589 = vpop.f32.mrf.mxu0
        %v590 = vpop.f32.mrf.mxu0
        %v591 = vpop.f32.mrf.mxu0
        %592 = vdwg.mxu0
        %593 = vst [vmem:[%s327] sm:$0xff] %v580
        %594 = vst [vmem:[%s327 + $0x8] sm:$0xff] %v583
        %595 = vst [vmem:[%s327 + $0x10] sm:$0xff] %v588
        %s596 = sand.u32 %s177, 1
        %s597 = scalar_lea.sflag [#allocation4], %s596
        %s598 = sand.u32 %s177, 1
        %s599 = smul.addr %s598, 24
        %s600 = scalar_lea.vmem [#allocation8], %s599
        // Predicated region
        $region53: #{tpu_custom_call.1} parent=39 // pred_check
          %p601 = pneg %p187
        $region54: #{tpu_custom_call.1} parent=39 // pred_check_branch
          %603 = sbr.rel (%p601) target = $region56
        $region55: #{tpu_custom_call.1} parent=39 // pred_region
          %s604 = smul.u32 3, %s28
          %s606 = ssub.s32 384, 384
          %607 = vsyncadd %s597, %s606
          %s608 = smul.addr %s27, 3
          %s609 = sadd.s32 %s604, %s608
          %s610 = smul.addr %s609, 128
          %s611 = scalar_lea.hbm %s5, %s610
          %s612 = sshll.u32 %s600, 4
          %s613 = int_to_ptr.vmem [resolvable:$true] %s612
          %618 = dma.vmem_to_hbm [thread:$0]  %s613, 384, %s611, %s597, 128, 128, 8
        $region56: #{tpu_custom_call.1} parent=39 // pred_fallthru
          _
      $region40: #{tpu_custom_call.1} parent=5 // pred_fallthru
        _
      %p619 = scmp.le.s32.totalorder 2, %s18
      // Predicated region
      $region57: #{tpu_custom_call.1} parent=5 // pred_check
        %p620 = pneg %p619
      $region58: #{tpu_custom_call.1} parent=5 // pred_check_branch
        %622 = sbr.rel (%p620) target = $region60
      $region59: #{tpu_custom_call.1} parent=5 // pred_region
        %s623 = ssub.s32 %s18, 2
        // Predicated region
        $region61: #{tpu_custom_call.1} parent=59 // pred_check
          %p624 = pneg %p193
        $region62: #{tpu_custom_call.1} parent=59 // pred_check_branch
          %626 = sbr.rel (%p624) target = $region64
        $region63: #{tpu_custom_call.1} parent=59 // pred_region
          %s627 = sand.u32 %s178, 1
          %s628 = scalar_lea.sflag [#allocation4], %s627
          %s629 = sand.u32 %s178, 1
          %s630 = smul.addr %s629, 24
          %s631 = scalar_lea.vmem [#allocation8], %s630
          %632 = dma.done %s628, 384
        $region64: #{tpu_custom_call.1} parent=59 // pred_fallthru
          _
      $region60: #{tpu_custom_call.1} parent=5 // pred_fallthru
        _
    $region6: #{tpu_custom_call.1} parent=1 // loop_footer
      %s22 = sadd.s32 1, %s18
    $region7: #{tpu_custom_call.1} parent=1 // loop_footer_branch
      %17 = sbr.rel target = $region3
    $region8: #{tpu_custom_call.1} parent=1 // loop_exit
      _
    %633 = vsyncpa [#allocation3], 1
    %s634 = scalar_lea.sflag [#allocation3], 1
    %635 = vsyncpa %s634, 1
    %636 = vsyncpa [#allocation6], 1
    %637 = vsyncpa [#allocation4], 1
    %s638 = scalar_lea.sflag [#allocation4], 1
    %639 = vsyncpa %s638, 1

</llo_original>
